<compile_context>
chip_gen: v6e
topology: v6e:2x2x1
jax: 0.10.0
libtpu: 0.0.40
codegen_flags: <defaults>
</compile_context>

<pallas_src>
import functools

import jax
import jax.numpy as jnp
from jax.experimental import pallas as pl
from jax.experimental.pallas import tpu as pltpu


# ------------------------- fused q/kv projection --------------------------- #
# Computes y^T = (x @ W + b)^T directly as (Cout, tm) blocks (channels-major),
# using the well-trodden NT contraction (contract last dims of both operands).

def _proj_cm_kernel(x_ref, wt_ref, b_ref, o_ref):
    # x: (tm, Cin), wt: (Cout, Cin), b: (Cout, 1)  ->  o: (Cout, tm)
    y_t = jax.lax.dot_general(
        wt_ref[...], x_ref[...],
        dimension_numbers=(((1,), (1,)), ((), ())),   # NT: contract Cin with Cin
        preferred_element_type=jnp.float32,
    )
    o_ref[...] = (y_t + b_ref[...]).astype(o_ref.dtype)


def project_channels_major(x2d, w_t, b, *, tm=256):
    """Return (x2d @ w_t.T + b).T laid out as (Cout, M) without an HBM transpose."""
    M, Cin = x2d.shape
    Cout = w_t.shape[0]
    if M % tm != 0:
        tm = 128 if M % 128 == 0 else M
    b_col = b.reshape(Cout, 1)
    return pl.pallas_call(
        _proj_cm_kernel,
        out_shape=jax.ShapeDtypeStruct((Cout, M), x2d.dtype),
        grid=(M // tm,),
        in_specs=[
            pl.BlockSpec((tm, Cin), lambda m: (m, 0)),
            pl.BlockSpec((Cout, Cin), lambda m: (0, 0)),
            pl.BlockSpec((Cout, 1), lambda m: (0, 0)),
        ],
        out_specs=pl.BlockSpec((Cout, tm), lambda m: (0, m)),
        compiler_params=pltpu.CompilerParams(dimension_semantics=("parallel",)),
    )(x2d, w_t, b_col)


# ----------------------------- output projection ---------------------------- #
# Consumes the channels-major attention output (Cin, M) and produces (M, Cout)
# rows-major via a TN contraction (contract leading dims of both operands).

def _proj_rm_kernel(xt_ref, w_ref, b_ref, o_ref):
    # xt: (Cin, tm), w: (Cin, Cout), b: (1, Cout)  ->  o: (tm, Cout)
    y = jax.lax.dot_general(
        xt_ref[...], w_ref[...],
        dimension_numbers=(((0,), (0,)), ((), ())),   # TN
        preferred_element_type=jnp.float32,
    )
    o_ref[...] = (y + b_ref[...]).astype(o_ref.dtype)


def project_rows_major(xt, w, b, *, tm=256):
    Cin, M = xt.shape
    Cout = w.shape[1]
    if M % tm != 0:
        tm = 128 if M % 128 == 0 else M
    b_row = b.reshape(1, Cout)
    return pl.pallas_call(
        _proj_rm_kernel,
        out_shape=jax.ShapeDtypeStruct((M, Cout), xt.dtype),
        grid=(M // tm,),
        in_specs=[
            pl.BlockSpec((Cin, tm), lambda m: (0, m)),
            pl.BlockSpec((Cin, Cout), lambda m: (0, 0)),
            pl.BlockSpec((1, Cout), lambda m: (0, 0)),
        ],
        out_specs=pl.BlockSpec((tm, Cout), lambda m: (m, 0)),
        compiler_params=pltpu.CompilerParams(dimension_semantics=("parallel",)),
    )(xt, w, b_row)


# ----------------------------- attention kernel ----------------------------- #

def _center_attn_kernel(qkv_ref, o_ref, *, H, W, C, nh, hc, ksize):
    # qkv_ref: (3C, H*W) for one batch, channels-major, H*W on the lane axis.
    #   rows [0,C)   : q (pre-scaled, head-major)
    #   rows [C,2C)  : k
    #   rows [2C,3C) : v
    HW = H * W
    pad = ksize // 2

    # Lane-index decomposition p -> (i, j) and per-offset validity masks.
    p_idx = jax.lax.broadcasted_iota(jnp.int32, (1, HW), 1)
    i_idx = p_idx // W
    j_idx = p_idx % W
    offsets = []
    for dh in range(ksize):
        for dw in range(ksize):
            di, dj = dh - pad, dw - pad
            valid = ((i_idx + di >= 0) & (i_idx + di < H)
                     & (j_idx + dj >= 0) & (j_idx + dj < W))
            offsets.append((di * W + dj, valid))

    for h in range(nh):
        r = h * hc
        q = qkv_ref[pl.ds(r, hc), :]            # (hc, HW)
        k = qkv_ref[pl.ds(C + r, hc), :]
        v = qkv_ref[pl.ds(2 * C + r, hc), :]

        # Logits for the ksize*ksize neighbour offsets (sublane reduce over hc).
        logits = []
        for s, valid in offsets:
            ks = k if s == 0 else pltpu.roll(k, shift=(-s) % HW, axis=1)
            lg = jnp.sum(q * ks, axis=0, keepdims=True)       # (1, HW)
            # Zero-padded neighbours contribute q . 0 = 0 exactly (reference).
            logits.append(jnp.where(valid, lg, 0.0))

        # Numerically stable softmax over the offsets.
        m = logits[0]
        for lg in logits[1:]:
            m = jnp.maximum(m, lg)
        exps = [jnp.exp(lg - m) for lg in logits]
        denom = exps[0]
        for e in exps[1:]:
            denom = denom + e

        # Unnormalised accumulation, single reciprocal at the end.
        acc = jnp.zeros((hc, HW), jnp.float32)
        for (s, valid), e in zip(offsets, exps):
            vs = v if s == 0 else pltpu.roll(v, shift=(-s) % HW, axis=1)
            vs = jnp.where(valid, vs, 0.0)
            acc = acc + e * vs                                  # (1,HW) bcast over hc

        inv = pl.reciprocal(denom)                              # exact EUP recip
        o_ref[pl.ds(r, hc), :] = (acc * inv).astype(o_ref.dtype)


def center_attention_core(qkvT, H, W, C, num_heads, ksize):
    three_c, BM = qkvT.shape
    HW = H * W
    B = BM // HW
    hc = C // num_heads
    kern = functools.partial(_center_attn_kernel, H=H, W=W, C=C,
                             nh=num_heads, hc=hc, ksize=ksize)
    return pl.pallas_call(
        kern,
        out_shape=jax.ShapeDtypeStruct((C, BM), qkvT.dtype),
        grid=(B,),
        in_specs=[pl.BlockSpec((three_c, HW), lambda b: (0, b))],
        out_specs=pl.BlockSpec((C, HW), lambda b: (0, b)),
        compiler_params=pltpu.CompilerParams(dimension_semantics=("parallel",)),
    )(qkvT)


# --------------------------------- forward ---------------------------------- #

def center_attention_forward(x, H, W, params, num_heads, kernel_size=3):
    """Equivalent of CenterAttention.forward(x, H, W) with stride=1, padding=True.

    x: (B, N, C) with N == H*W.  Dropout layers are identity (p=0.0 / eval).
    """
    B, N, C = x.shape
    assert N == H * W and C % num_heads == 0
    # TODO(synk): generic H*W not a multiple of 128 needs a lane-padded layout.
    assert (H * W) % 128 == 0
    hc = C // num_heads
    scale = hc ** (-0.5)

    # Fuse q and kv projections; fold the 1/sqrt(hc) scale into the q weights.
    # Weights are stored transposed (Cout, Cin) so the projection kernel can use
    # an NT contraction and emit channels-major output directly.
    w_qkv_t = jnp.concatenate([params["wq"] * scale, params["wkv"]], axis=1).T  # (3C, C)
    b_qkv = jnp.concatenate([params["bq"] * scale, params["bkv"]], axis=0)      # (3C,)

    x2d = x.reshape(B * N, C)
    qkvT = project_channels_major(x2d, w_qkv_t, b_qkv)          # (3C, B*N)

    outT = center_attention_core(qkvT, H, W, C, num_heads, kernel_size)  # (C, B*N)

    out2d = project_rows_major(outT, params["wp"], params["bp"])         # (B*N, C)
    return out2d.reshape(B, N, C)


# ---------------------------- pure-JAX reference ----------------------------- #

def reference_forward(x, H, W, params, num_heads, kernel_size=3):
    B, N, C = x.shape
    hc = C // num_heads
    pad = kernel_size // 2
    scale = hc ** (-0.5)
    xh = x.reshape(B, H, W, C)
    q = (xh @ params["wq"] + params["bq"]).reshape(B, H, W, num_heads, hc) * scale
    kv = (xh @ params["wkv"] + params["bkv"]).reshape(B, H, W, 2, num_heads, hc)
    k = kv[:, :, :, 0]
    v = kv[:, :, :, 1]
    padw = ((0, 0), (pad, pad), (pad, pad), (0, 0), (0, 0))
    k_pad = jnp.pad(k, padw)
    v_pad = jnp.pad(v, padw)
    logits, vals = [], []
    for dh in range(kernel_size):
        for dw in range(kernel_size):
            ks = k_pad[:, dh:dh + H, dw:dw + W]
            logits.append(jnp.sum(q * ks, axis=-1))
            vals.append(v_pad[:, dh:dh + H, dw:dw + W])
    L = jnp.stack(logits, axis=-1)                  # (B, H, W, nh, k*k)
    A = jax.nn.softmax(L, axis=-1)
    out = sum(A[..., i:i + 1] * vals[i] for i in range(len(vals)))
    out = out.reshape(B, H, W, C) @ params["wp"] + params["bp"]
    return out.reshape(B, N, C)


# ----------------------------------- main ------------------------------------ #

if __name__ == "__main__":
    B, H, W, C = 2, 16, 16, 16
    num_heads = 2
    N = H * W

    key = jax.random.PRNGKey(0)
    kx, k1, k2, k3 = jax.random.split(key, 4)
    x = jax.random.normal(kx, (B, N, C), dtype=jnp.float32)

    # Deterministic parameter init (shapes match nn.Linear(dim, dim),
    # nn.Linear(dim, 2*dim), nn.Linear(dim, dim); weights stored as (in, out)).
    params = {
        "wq": 0.05 * jax.random.normal(k1, (C, C), dtype=jnp.float32),
        "bq": jnp.linspace(-0.1, 0.1, C, dtype=jnp.float32),
        "wkv": 0.05 * jax.random.normal(k2, (C, 2 * C), dtype=jnp.float32),
        "bkv": jnp.linspace(-0.1, 0.1, 2 * C, dtype=jnp.float32),
        "wp": 0.05 * jax.random.normal(k3, (C, C), dtype=jnp.float32),
        "bp": jnp.linspace(-0.1, 0.1, C, dtype=jnp.float32),
    }

    out = center_attention_forward(x, H, W, params, num_heads, kernel_size=3)
    out = jax.block_until_ready(out)

    ref = reference_forward(x, H, W, params, num_heads, kernel_size=3)
    err = float(jnp.max(jnp.abs(out - ref)))
    ref_scale = float(jnp.max(jnp.abs(ref))) + 1e-8
    assert err / ref_scale < 1e-3, f"mismatch: max_abs_err={err}, ref_scale={ref_scale}"

    print("KERNEL_OK")
</pallas_src>

<mosaic_0001>
module attributes {stable_mosaic.version = 11 : i64} {
  func.func @_proj_cm_kernel(%arg0: i32, %arg1: memref<256x16xf32, #tpu.memory_space<vmem>>, %arg2: memref<48x16xf32, #tpu.memory_space<vmem>>, %arg3: memref<48x1xf32, #tpu.memory_space<vmem>>, %arg4: memref<48x256xf32, #tpu.memory_space<vmem>>) attributes {dimension_semantics = [#tpu.dimension_semantics<parallel>], iteration_bounds = array<i64: 2>, scalar_prefetch = 0 : i64, scratch_operands = 0 : i64, tpu.core_type = #tpu.core_type<tc>, window_params = [{transform_indices = @transform_0, window_bounds = array<i64: 256, 16>}, {pipeline_mode = #tpu.pipeline_mode<synchronous>, transform_indices = @transform_1, window_bounds = array<i64: 48, 16>}, {pipeline_mode = #tpu.pipeline_mode<synchronous>, transform_indices = @transform_2, window_bounds = array<i64: 48, 1>}, {transform_indices = @transform_3, window_bounds = array<i64: 48, 256>}]} {
    %c0 = arith.constant 0 : index
    %c0_0 = arith.constant 0 : index
    %0 = vector.load %arg2[%c0, %c0_0] : memref<48x16xf32, #tpu.memory_space<vmem>>, vector<48x16xf32>
    %c0_1 = arith.constant 0 : index
    %c0_2 = arith.constant 0 : index
    %1 = vector.load %arg1[%c0_1, %c0_2] : memref<256x16xf32, #tpu.memory_space<vmem>>, vector<256x16xf32>
    %cst = arith.constant dense<0.000000e+00> : vector<48x256xf32>
    %2 = tpu.matmul %0, %1, %cst {dimension_numbers = #tpu.dot_dimension_numbers<[1], [1], [0], [0], [0, 0, 1, 0], [], []>} : vector<48x16xf32>, vector<256x16xf32>, vector<48x256xf32> -> vector<48x256xf32>
    %c0_3 = arith.constant 0 : index
    %c0_4 = arith.constant 0 : index
    %3 = vector.load %arg3[%c0_3, %c0_4] : memref<48x1xf32, #tpu.memory_space<vmem>>, vector<48x1xf32>
    %4 = vector.broadcast %3 : vector<48x1xf32> to vector<48x256xf32>
    %5 = arith.addf %2, %4 : vector<48x256xf32>
    %c0_5 = arith.constant 0 : index
    %c0_6 = arith.constant 0 : index
    %6 = vector.load %arg4[%c0_5, %c0_6] : memref<48x256xf32, #tpu.memory_space<vmem>>, vector<48x256xf32>
    tpu.vector_store %arg4[%c0_5, %c0_6], %5 {strides = array<i32>} : memref<48x256xf32, #tpu.memory_space<vmem>>, vector<48x256xf32>,
    return
  }
  func.func @transform_0(%arg0: i32) -> (i32, i32) {
    %c0_i32 = arith.constant 0 : i32
    %c0_i32_0 = arith.constant 0 : i32
    return %arg0, %c0_i32 : i32, i32
  }
  func.func @transform_1(%arg0: i32) -> (i32, i32) {
    %c0_i32 = arith.constant 0 : i32
    %c0_i32_0 = arith.constant 0 : i32
    %c0_i32_1 = arith.constant 0 : i32
    return %c0_i32, %c0_i32_0 : i32, i32
  }
  func.func @transform_2(%arg0: i32) -> (i32, i32) {
    %c0_i32 = arith.constant 0 : i32
    %c0_i32_0 = arith.constant 0 : i32
    %c0_i32_1 = arith.constant 0 : i32
    return %c0_i32, %c0_i32_0 : i32, i32
  }
  func.func @transform_3(%arg0: i32) -> (i32, i32) {
    %c0_i32 = arith.constant 0 : i32
    %c0_i32_0 = arith.constant 0 : i32
    return %c0_i32, %arg0 : i32, i32
  }
}

</mosaic_0001>

<llo_original>
// kernel: tpu_custom_call.1
$region0: #{tpu_custom_call.1}
  #allocation0 [shape = 'u32[]', space=smem, size = 0x4, offset = 0x4, fixed_abs, tag = 'smem constant byte address 0x4 - core index']
  #allocation1 [shape = 'u32[144,128]{1,0:T(1,128)}', space=vmem, size = 0x12000, scoped, tag = 'internal scratch']
  %s0 = inlined_call_operand.vmem [shape: f32[512,16], index: 0, kind: input, shape index: {}]
  %s1 = inlined_call_operand.vmem [shape: f32[48,16], index: 1, kind: input, shape index: {}]
  %s2 = inlined_call_operand.vmem [shape: f32[48,1], index: 2, kind: input, shape index: {}]
  %s3 = inlined_call_operand.hbm [shape: f32[48,512], index: 3, kind: output, shape index: {}]
  %s4 = sld [smem:[#allocation0]]
  $region45: #{tpu_custom_call.1} parent=0
    _
  %s6 = ssub.s32 1, %s4
  %s7 = scalar_select 0, %s6, %s4
  $region1: #{tpu_custom_call.1} parent=0
    #allocation2 [shape = 'u8[98304]{0}', space=vmem, size = 0x18000, scoped, tag = 'output window, operand 0']
    #allocation3 [shape = 's32[2]{0}', space=sflag, size = 0x8, scoped, tag = 'scoped memory for tpu_custom_call.1']
    %8 = vsyncpa [#allocation3], 0
    %s9 = scalar_lea.sflag [#allocation3], 1
    %10 = vsyncpa %s9, 0
    loop: start=0, step=1, limit=4
    $region2: #{tpu_custom_call.1} parent=1 // loop_pre_header
      _
    $region3: #{tpu_custom_call.1} parent=1 // loop_header
      %s12 = sphi 0, %s16
      %p13 = scmp.ge.s32.totalorder %s12, 4
      %s22 = sphi 0, %s24
      %s25 = sphi 0, %s22
      %s26 = sphi 0, %s25
      %s42 = sphi 0, %s26
      %s46 = sphi 0, %s46
      %s48 = sphi 0, %s46
      %s49 = sphi 0, %s48
      %s63 = sphi 0, %s49
      %s67 = sphi 0, %s67
      %s69 = sphi 0, %s67
      %s70 = sphi 0, %s69
      %s84 = sphi 0, %s70
      %s90 = sphi 0, %s92
      %s93 = sphi 0, %s90
      %s94 = sphi 0, %s93
      %s110 = sphi 0, %s94
    $region4: #{tpu_custom_call.1} parent=1 // loop_header_branch
      %15 = sbr.rel (%p13) target = $region8
    $region5: #{tpu_custom_call.1} parent=1 // loop_body
      %s17 = ssub.s32 %s12, 1
      %s18 = ssub.s32 %s12, 2
      %s19 = sadd.s32 %s12, 1
      %s20 = ssub.s32 %s12, %s19
      %p21 = scmp.eq.s32.totalorder %s20, 0
      %s23 = sadd.s32 %s22, 1
      %s24 = scalar_select %p21, %s22, %s23
      %p27 = pneg %p21
      %p28 = scmp.eq.s32.totalorder %s12, 1
      %p29 = por %p27, %p28
      %p30 = scmp.ne.s32.totalorder %s22, %s25
      %p31 = scmp.eq.s32.totalorder %s12, 0
      %p32 = por %p30, %p31
      %p33 = scmp.ne.s32.totalorder %s22, %s25
      %p34 = scmp.eq.s32.totalorder %s17, 1
      %p35 = por %p33, %p34
      %p36 = scmp.ne.s32.totalorder %s25, %s26
      %p37 = scmp.eq.s32.totalorder %s17, 0
      %p38 = por %p36, %p37
      %p39 = scmp.ne.s32.totalorder %s25, %s26
      %p40 = scmp.eq.s32.totalorder %s18, 1
      %p41 = por %p39, %p40
      %p43 = scmp.ne.s32.totalorder %s26, %s42
      %p44 = scmp.eq.s32.totalorder %s18, 0
      %p45 = por %p43, %p44
      %s47 = sadd.s32 %s46, 1
      %p50 = scmp.eq.s32.totalorder %s12, 1
      %p51 = scmp.ne.s32.totalorder %s46, %s48
      %p52 = scmp.eq.s32.totalorder %s12, 0
      %p53 = por %p51, %p52
      %p54 = scmp.ne.s32.totalorder %s46, %s48
      %p55 = scmp.eq.s32.totalorder %s17, 1
      %p56 = por %p54, %p55
      %p57 = scmp.ne.s32.totalorder %s48, %s49
      %p58 = scmp.eq.s32.totalorder %s17, 0
      %p59 = por %p57, %p58
      %p60 = scmp.ne.s32.totalorder %s48, %s49
      %p61 = scmp.eq.s32.totalorder %s18, 1
      %p62 = por %p60, %p61
      %p64 = scmp.ne.s32.totalorder %s49, %s63
      %p65 = scmp.eq.s32.totalorder %s18, 0
      %p66 = por %p64, %p65
      %s68 = sadd.s32 %s67, 1
      %p71 = scmp.eq.s32.totalorder %s12, 1
      %p72 = scmp.ne.s32.totalorder %s67, %s69
      %p73 = scmp.eq.s32.totalorder %s12, 0
      %p74 = por %p72, %p73
      %p75 = scmp.ne.s32.totalorder %s67, %s69
      %p76 = scmp.eq.s32.totalorder %s17, 1
      %p77 = por %p75, %p76
      %p78 = scmp.ne.s32.totalorder %s69, %s70
      %p79 = scmp.eq.s32.totalorder %s17, 0
      %p80 = por %p78, %p79
      %p81 = scmp.ne.s32.totalorder %s69, %s70
      %p82 = scmp.eq.s32.totalorder %s18, 1
      %p83 = por %p81, %p82
      %p85 = scmp.ne.s32.totalorder %s70, %s84
      %p86 = scmp.eq.s32.totalorder %s18, 0
      %p87 = por %p85, %p86
      %s88 = ssub.s32 %s12, %s19
      %p89 = scmp.eq.s32.totalorder %s88, 0
      %s91 = sadd.s32 %s90, 1
      %s92 = scalar_select %p89, %s90, %s91
      %p95 = pneg %p89
      %p96 = scmp.eq.s32.totalorder %s12, 1
      %p97 = por %p95, %p96
      %p98 = scmp.ne.s32.totalorder %s90, %s93
      %p99 = scmp.eq.s32.totalorder %s12, 0
      %p100 = por %p98, %p99
      %p101 = scmp.ne.s32.totalorder %s90, %s93
      %p102 = scmp.eq.s32.totalorder %s17, 1
      %p103 = por %p101, %p102
      %p104 = scmp.ne.s32.totalorder %s93, %s94
      %p105 = scmp.eq.s32.totalorder %s17, 0
      %p106 = por %p104, %p105
      %p107 = scmp.ne.s32.totalorder %s93, %s94
      %p108 = scmp.eq.s32.totalorder %s18, 1
      %p109 = por %p107, %p108
      %p111 = scmp.ne.s32.totalorder %s94, %s110
      %p112 = scmp.eq.s32.totalorder %s18, 0
      %p113 = por %p111, %p112
      %p114 = scmp.le.s32.totalorder 1, %s12
      %p115 = scmp.lt.s32.totalorder %s12, 3
      %p116 = pnand %p114, %p115
      %p117 = pneg %p116
      // Predicated region
      $region9: #{tpu_custom_call.1} parent=5 // pred_check
        _
      $region10: #{tpu_custom_call.1} parent=5 // pred_check_branch
        %119 = sbr.rel (%p116) target = $region12
      $region11: #{tpu_custom_call.1} parent=5 // pred_region
        %s120 = ssub.s32 %s12, 1
        // Predicated region
        $region13: #{tpu_custom_call.1} parent=11 // pred_check
          %p121 = pneg %p59
        $region14: #{tpu_custom_call.1} parent=11 // pred_check_branch
          %123 = sbr.rel (%p121) target = $region16
        $region15: #{tpu_custom_call.1} parent=11 // pred_region
          _
        $region16: #{tpu_custom_call.1} parent=11 // pred_fallthru
          _
        // Predicated region
        $region17: #{tpu_custom_call.1} parent=11 // pred_check
          %p124 = pneg %p80
        $region18: #{tpu_custom_call.1} parent=11 // pred_check_branch
          %126 = sbr.rel (%p124) target = $region20
        $region19: #{tpu_custom_call.1} parent=11 // pred_region
          _
        $region20: #{tpu_custom_call.1} parent=11 // pred_fallthru
          _
      $region12: #{tpu_custom_call.1} parent=5 // pred_fallthru
        _
      %p127 = scmp.lt.s32.totalorder %s12, 2
      // Predicated region
      $region21: #{tpu_custom_call.1} parent=5 // pred_check
        %p128 = pneg %p127
      $region22: #{tpu_custom_call.1} parent=5 // pred_check_branch
        %130 = sbr.rel (%p128) target = $region24
      $region23: #{tpu_custom_call.1} parent=5 // pred_region
        // Predicated region
        $region25: #{tpu_custom_call.1} parent=23 // pred_check
          %p131 = pneg %p32
        $region26: #{tpu_custom_call.1} parent=23 // pred_check_branch
          %133 = sbr.rel (%p131) target = $region28
        $region27: #{tpu_custom_call.1} parent=23 // pred_region
          %s134 = smul.u32 32, %s12
          %p135 = scmp.lt.s32.totalorder %s134, 63
          %s136 = scalar_select %p135, %s134, 63
          %s137 = smul.addr %s136, 8
          %s138 = scalar_lea.vmem %s0, %s137
          %s139 = smul.u32 32, %s12
        $region28: #{tpu_custom_call.1} parent=23 // pred_fallthru
          _
      $region24: #{tpu_custom_call.1} parent=5 // pred_fallthru
        _
      %p140 = scmp.le.s32.totalorder 1, %s12
      %p141 = scmp.lt.s32.totalorder %s12, 3
      %p142 = pnand %p140, %p141
      %p143 = pneg %p142
      // Predicated region
      $region29: #{tpu_custom_call.1} parent=5 // pred_check
        _
      $region30: #{tpu_custom_call.1} parent=5 // pred_check_branch
        %145 = sbr.rel (%p142) target = $region32
      $region31: #{tpu_custom_call.1} parent=5 // pred_region
        %s146 = ssub.s32 %s12, 1
        %s147 = smul.u32 32, %s17
        %p148 = scmp.lt.s32.totalorder %s147, 63
        %s149 = scalar_select %p148, %s147, 63
        %s150 = smul.addr %s149, 8
        %s151 = scalar_lea.vmem %s0, %s150
        %p152 = pneg %p38
        %p153 = pneg %p35
        %p154 = pneg %p59
        %p155 = pneg %p56
        %p156 = pneg %p80
        %p157 = pneg %p77
        %p158 = pneg %p106
        %p159 = pneg %p103
        %s160 = sand.u32 %s93, 1
        %s161 = scalar_lea.sflag [#allocation3], %s160
        %s162 = sand.u32 %s93, 1
        %s163 = smul.addr %s162, 96
        %s164 = scalar_lea.vmem [#allocation2], %s163
        %s165 = smul.u32 32, %s17
        %p166 = scmp.lt.s32.totalorder %s165, 63
        %s167 = scalar_select %p166, %s165, 63
        %s168 = smul.addr %s167, 8
        %s169 = scalar_lea.vmem %s0, %s168
        %s170 = smul.u32 32, %s17
        %s171 = smul.u32 2, %s17
        %v172 = vld [vmem:[%s1] sm:$0xff]
        %v173 = vld [vmem:[%s1 + $0x8] sm:$0xff]
        %v174 = vld [vmem:[%s1 + $0x10] sm:$0xff]
        %v175 = vld [vmem:[%s1 + $0x18] sm:$0xff]
        %v176 = vld [vmem:[%s1 + $0x20] sm:$0xff]
        %v177 = vld [vmem:[%s1 + $0x28] sm:$0xff]
        %v178 = vld [vmem:[%s169] sm:$0xff]
        %v179 = vld [vmem:[%s169 + $0x8] sm:$0xff]
        %v180 = vld [vmem:[%s169 + $0x10] sm:$0xff]
        %v181 = vld [vmem:[%s169 + $0x18] sm:$0xff]
        %v182 = vld [vmem:[%s169 + $0x20] sm:$0xff]
        %v183 = vld [vmem:[%s169 + $0x28] sm:$0xff]
        %v184 = vld [vmem:[%s169 + $0x30] sm:$0xff]
        %v185 = vld [vmem:[%s169 + $0x38] sm:$0xff]
        %v186 = vld [vmem:[%s169 + $0x40] sm:$0xff]
        %v187 = vld [vmem:[%s169 + $0x48] sm:$0xff]
        %v188 = vld [vmem:[%s169 + $0x50] sm:$0xff]
        %v189 = vld [vmem:[%s169 + $0x58] sm:$0xff]
        %v190 = vld [vmem:[%s169 + $0x60] sm:$0xff]
        %v191 = vld [vmem:[%s169 + $0x68] sm:$0xff]
        %v192 = vld [vmem:[%s169 + $0x70] sm:$0xff]
        %v193 = vld [vmem:[%s169 + $0x78] sm:$0xff]
        %v194 = vld [vmem:[%s169 + $0x80] sm:$0xff]
        %v195 = vld [vmem:[%s169 + $0x88] sm:$0xff]
        %v196 = vld [vmem:[%s169 + $0x90] sm:$0xff]
        %v197 = vld [vmem:[%s169 + $0x98] sm:$0xff]
        %v198 = vld [vmem:[%s169 + $0xa0] sm:$0xff]
        %v199 = vld [vmem:[%s169 + $0xa8] sm:$0xff]
        %v200 = vld [vmem:[%s169 + $0xb0] sm:$0xff]
        %v201 = vld [vmem:[%s169 + $0xb8] sm:$0xff]
        %v202 = vld [vmem:[%s169 + $0xc0] sm:$0xff]
        %v203 = vld [vmem:[%s169 + $0xc8] sm:$0xff]
        %v204 = vld [vmem:[%s169 + $0xd0] sm:$0xff]
        %v205 = vld [vmem:[%s169 + $0xd8] sm:$0xff]
        %v206 = vld [vmem:[%s169 + $0xe0] sm:$0xff]
        %v207 = vld [vmem:[%s169 + $0xe8] sm:$0xff]
        %v208 = vld [vmem:[%s169 + $0xf0] sm:$0xff]
        %v209 = vld [vmem:[%s169 + $0xf8] sm:$0xff]
        %v210 = vld [vmem:[%s2] sm:$0xff]
        %v211 = vld [vmem:[%s2 + $0x8] sm:$0xff]
        %v212 = vld [vmem:[%s2 + $0x10] sm:$0xff]
        %v213 = vld [vmem:[%s2 + $0x18] sm:$0xff]
        %v214 = vld [vmem:[%s2 + $0x20] sm:$0xff]
        %v215 = vld [vmem:[%s2 + $0x28] sm:$0xff]
        %217 = vset.pattern.permute.xlu0 0
        %218 = vperm.xlu0 %217, %v210
        %v219 = vpop.permute.xlu0 %218
        %222 = vset.pattern.permute.xlu0 0
        %223 = vperm.xlu0 %222, %v211
        %v224 = vpop.permute.xlu0 %223
        %227 = vset.pattern.permute.xlu0 0
        %228 = vperm.xlu0 %227, %v212
        %v229 = vpop.permute.xlu0 %228
        %232 = vset.pattern.permute.xlu0 0
        %233 = vperm.xlu0 %232, %v213
        %v234 = vpop.permute.xlu0 %233
        %237 = vset.pattern.permute.xlu0 0
        %238 = vperm.xlu0 %237, %v214
        %v239 = vpop.permute.xlu0 %238
        %242 = vset.pattern.permute.xlu0 0
        %243 = vperm.xlu0 %242, %v215
        %v244 = vpop.permute.xlu0 %243
        %vm246 = vcmask 130048
        %v248 = vsel %vm246, %v172, 0
        %v251 = vsel %vm246, %v173, 0
        %v254 = vsel %vm246, %v174, 0
        %v257 = vsel %vm246, %v175, 0
        %v260 = vsel %vm246, %v176, 0
        %v263 = vsel %vm246, %v177, 0
        %v266 = vsel %vm246, %v178, 0
        %v269 = vsel %vm246, %v179, 0
        %v272 = vsel %vm246, %v180, 0
        %v275 = vsel %vm246, %v181, 0
        %v278 = vsel %vm246, %v182, 0
        %v281 = vsel %vm246, %v183, 0
        %v284 = vsel %vm246, %v184, 0
        %v287 = vsel %vm246, %v185, 0
        %v290 = vsel %vm246, %v186, 0
        %v293 = vsel %vm246, %v187, 0
        %v296 = vsel %vm246, %v188, 0
        %v299 = vsel %vm246, %v189, 0
        %v302 = vsel %vm246, %v190, 0
        %v305 = vsel %vm246, %v191, 0
        %v308 = vsel %vm246, %v192, 0
        %v311 = vsel %vm246, %v193, 0
        %v314 = vsel %vm246, %v194, 0
        %v317 = vsel %vm246, %v195, 0
        %v320 = vsel %vm246, %v196, 0
        %v323 = vsel %vm246, %v197, 0
        %v326 = vsel %vm246, %v198, 0
        %v329 = vsel %vm246, %v199, 0
        %v332 = vsel %vm246, %v200, 0
        %v335 = vsel %vm246, %v201, 0
        %v338 = vsel %vm246, %v202, 0
        %v341 = vsel %vm246, %v203, 0
        %v344 = vsel %vm246, %v204, 0
        %v347 = vsel %vm246, %v205, 0
        %v350 = vsel %vm246, %v206, 0
        %v353 = vsel %vm246, %v207, 0
        %v356 = vsel %vm246, %v208, 0
        %v359 = vsel %vm246, %v209, 0
        %361 = vmatprep.subr.mxu0 0.0
        %362 = vmatpush1.xpose.msra.mxu0 %v311
        %363 = vmatprep.subr.mxu0 0.0
        %364 = vmatpush1.xpose.msra.mxu0 %v308
        %365 = vmatprep.subr.mxu0 0.0
        %366 = vmatpush1.xpose.msra.mxu0 %v305
        %367 = vmatprep.subr.mxu0 0.0
        %368 = vmatpush1.xpose.msra.mxu0 %v302
        %369 = vmatprep.subr.mxu0 0.0
        %370 = vmatpush1.xpose.msra.mxu0 %v299
        %371 = vmatprep.subr.mxu0 0.0
        %372 = vmatpush1.xpose.msra.mxu0 %v296
        %373 = vmatprep.subr.mxu0 0.0
        %374 = vmatpush1.xpose.msra.mxu0 %v293
        %375 = vmatprep.subr.mxu0 0.0
        %376 = vmatpush1.xpose.msra.mxu0 %v290
        %377 = vmatprep.subr.mxu0 0.0
        %378 = vmatpush1.xpose.msra.mxu0 %v287
        %379 = vmatprep.subr.mxu0 0.0
        %380 = vmatpush1.xpose.msra.mxu0 %v284
        %381 = vmatprep.subr.mxu0 0.0
        %382 = vmatpush1.xpose.msra.mxu0 %v281
        %383 = vmatprep.subr.mxu0 0.0
        %384 = vmatpush1.xpose.msra.mxu0 %v278
        %385 = vmatprep.subr.mxu0 0.0
        %386 = vmatpush1.xpose.msra.mxu0 %v275
        %387 = vmatprep.subr.mxu0 0.0
        %388 = vmatpush1.xpose.msra.mxu0 %v272
        %389 = vmatprep.subr.mxu0 0.0
        %390 = vmatpush1.xpose.msra.mxu0 %v269
        %391 = vmatprep.subr.mxu0 0.0
        %392 = vmatpush1.xpose.msra.mxu0 %v266
        %393 = vmatprep.subr.mxu0 0.0
        %394 = vmatpush2.xpose.msra.mxu0 %v359
        %395 = vmatprep.subr.mxu0 0.0
        %396 = vmatpush2.xpose.msra.mxu0 %v356
        %397 = vmatprep.subr.mxu0 0.0
        %398 = vmatpush2.xpose.msra.mxu0 %v353
        %399 = vmatprep.subr.mxu0 0.0
        %400 = vmatpush2.xpose.msra.mxu0 %v350
        %401 = vmatprep.subr.mxu0 0.0
        %402 = vmatpush2.xpose.msra.mxu0 %v347
        %403 = vmatprep.subr.mxu0 0.0
        %404 = vmatpush2.xpose.msra.mxu0 %v344
        %405 = vmatprep.subr.mxu0 0.0
        %406 = vmatpush2.xpose.msra.mxu0 %v341
        %407 = vmatprep.subr.mxu0 0.0
        %408 = vmatpush2.xpose.msra.mxu0 %v338
        %409 = vmatprep.subr.mxu0 0.0
        %410 = vmatpush2.xpose.msra.mxu0 %v335
        %411 = vmatprep.subr.mxu0 0.0
        %412 = vmatpush2.xpose.msra.mxu0 %v332
        %413 = vmatprep.subr.mxu0 0.0
        %414 = vmatpush2.xpose.msra.mxu0 %v329
        %415 = vmatprep.subr.mxu0 0.0
        %416 = vmatpush2.xpose.msra.mxu0 %v326
        %417 = vmatprep.subr.mxu0 0.0
        %418 = vmatpush2.xpose.msra.mxu0 %v323
        %419 = vmatprep.subr.mxu0 0.0
        %420 = vmatpush2.xpose.msra.mxu0 %v320
        %421 = vmatprep.subr.mxu0 0.0
        %422 = vmatpush2.xpose.msra.mxu0 %v317
        %423 = vmatprep.subr.mxu0 0.0
        %424 = vmatpush2.xpose.msra.mxu0 %v314
        %425 = vmatprep.mubr.f32.mxu0 0.0
        %426 = vmatmul.mubr.f32.gmra.mxu0 %v248
        %v427 = vpop.f32.mrf.mxu0
        %v428 = vadd.f32 %v219, %v427
        %v429 = vpop.f32.mrf.mxu0
        %v430 = vadd.f32 %v219, %v429
        %431 = vmatprep.mubr.f32.mxu0 0.0
        %432 = vmatmul.mubr.f32.gmra.mxu0 %v251
        %v433 = vpop.f32.mrf.mxu0
        %v434 = vadd.f32 %v224, %v433
        %v435 = vpop.f32.mrf.mxu0
        %v436 = vadd.f32 %v224, %v435
        %437 = vmatprep.mubr.f32.mxu0 0.0
        %438 = vmatmul.mubr.f32.gmra.mxu0 %v254
        %v439 = vpop.f32.mrf.mxu0
        %v440 = vadd.f32 %v229, %v439
        %v441 = vpop.f32.mrf.mxu0
        %v442 = vadd.f32 %v229, %v441
        %443 = vmatprep.mubr.f32.mxu0 0.0
        %444 = vmatmul.mubr.f32.gmra.mxu0 %v257
        %v445 = vpop.f32.mrf.mxu0
        %v446 = vadd.f32 %v234, %v445
        %v447 = vpop.f32.mrf.mxu0
        %v448 = vadd.f32 %v234, %v447
        %449 = vmatprep.mubr.f32.mxu0 0.0
        %450 = vmatmul.mubr.f32.gmra.mxu0 %v260
        %v451 = vpop.f32.mrf.mxu0
        %v452 = vadd.f32 %v239, %v451
        %v453 = vpop.f32.mrf.mxu0
        %v454 = vadd.f32 %v239, %v453
        %455 = vmatprep.mubr.f32.mxu0 0.0
        %456 = vmatmul.mubr.f32.gmra.mxu0 %v263
        %v457 = vpop.f32.mrf.mxu0
        %v458 = vadd.f32 %v244, %v457
        %v459 = vpop.f32.mrf.mxu0
        %v460 = vadd.f32 %v244, %v459
        %461 = vdwg.mxu0
        %462 = vst [vmem:[%s164] sm:$0xff] %v428
        %463 = vst [vmem:[%s164 + $0x8] sm:$0xff] %v430
        %464 = vst [vmem:[%s164 + $0x10] sm:$0xff] %v434
        %465 = vst [vmem:[%s164 + $0x18] sm:$0xff] %v436
        %466 = vst [vmem:[%s164 + $0x20] sm:$0xff] %v440
        %467 = vst [vmem:[%s164 + $0x28] sm:$0xff] %v442
        %468 = vst [vmem:[%s164 + $0x30] sm:$0xff] %v446
        %469 = vst [vmem:[%s164 + $0x38] sm:$0xff] %v448
        %470 = vst [vmem:[%s164 + $0x40] sm:$0xff] %v452
        %471 = vst [vmem:[%s164 + $0x48] sm:$0xff] %v454
        %472 = vst [vmem:[%s164 + $0x50] sm:$0xff] %v458
        %473 = vst [vmem:[%s164 + $0x58] sm:$0xff] %v460
        %s474 = sand.u32 %s93, 1
        %s475 = scalar_lea.sflag [#allocation3], %s474
        %s476 = sand.u32 %s93, 1
        %s477 = smul.addr %s476, 96
        %s478 = scalar_lea.vmem [#allocation2], %s477
        // Predicated region
        $region33: #{tpu_custom_call.1} parent=31 // pred_check
          %p479 = pneg %p103
        $region34: #{tpu_custom_call.1} parent=31 // pred_check_branch
          %481 = sbr.rel (%p479) target = $region36
        $region35: #{tpu_custom_call.1} parent=31 // pred_region
          %s482 = smul.u32 2, %s17
          %s484 = ssub.s32 1536, 1536
          %485 = vsyncadd %s475, %s484
          %s486 = smul.addr %s482, 128
          %s487 = scalar_lea.hbm %s3, %s486
          %s488 = sshll.u32 %s478, 4
          %s489 = int_to_ptr.vmem [resolvable:$true] %s488
          %494 = dma.vmem_to_hbm [thread:$0]  %s489, 1536, %s487, %s475, 256, 512, 16
        $region36: #{tpu_custom_call.1} parent=31 // pred_fallthru
          _
      $region32: #{tpu_custom_call.1} parent=5 // pred_fallthru
        _
      %p495 = scmp.le.s32.totalorder 2, %s12
      // Predicated region
      $region37: #{tpu_custom_call.1} parent=5 // pred_check
        %p496 = pneg %p495
      $region38: #{tpu_custom_call.1} parent=5 // pred_check_branch
        %498 = sbr.rel (%p496) target = $region40
      $region39: #{tpu_custom_call.1} parent=5 // pred_region
        %s499 = ssub.s32 %s12, 2
        // Predicated region
        $region41: #{tpu_custom_call.1} parent=39 // pred_check
          %p500 = pneg %p109
        $region42: #{tpu_custom_call.1} parent=39 // pred_check_branch
          %502 = sbr.rel (%p500) target = $region44
        $region43: #{tpu_custom_call.1} parent=39 // pred_region
          %s503 = sand.u32 %s94, 1
          %s504 = scalar_lea.sflag [#allocation3], %s503
          %s505 = sand.u32 %s94, 1
          %s506 = smul.addr %s505, 96
          %s507 = scalar_lea.vmem [#allocation2], %s506
          %508 = dma.done %s504, 1536
        $region44: #{tpu_custom_call.1} parent=39 // pred_fallthru
          _
      $region40: #{tpu_custom_call.1} parent=5 // pred_fallthru
        _
    $region6: #{tpu_custom_call.1} parent=1 // loop_footer
      %s16 = sadd.s32 1, %s12
    $region7: #{tpu_custom_call.1} parent=1 // loop_footer_branch
      %11 = sbr.rel target = $region3
    $region8: #{tpu_custom_call.1} parent=1 // loop_exit
      _
    %509 = vsyncpa [#allocation3], 1
    %s510 = scalar_lea.sflag [#allocation3], 1
    %511 = vsyncpa %s510, 1

</llo_original>
